<compile_context>
chip_gen: v7x
topology: tpu7x:2x2x1
jax: 0.10.0
libtpu: 0.0.40
codegen_flags: <defaults>
</compile_context>

<pallas_src>
import jax
import jax.numpy as jnp
from jax.experimental import pallas as pl
from jax.experimental.pallas import tpu as pltpu


def _round_up(x, m):
    return ((x + m - 1) // m) * m


def refiner_kernel(xy_ref, w_in_ref, b_in_ref, w1_ref, b1_ref, w2_ref, b2_ref,
                   out_ref):
    # layer 0: block-diagonal packed mlp_X / mlp_Y -> [TM, 2H]
    #          (bf16 x bf16 matmul, f32 accumulate, f32 bias + tanh)
    h0 = jnp.tanh(
        jnp.dot(xy_ref[...], w_in_ref[...], preferred_element_type=jnp.float32)
        + b_in_ref[...])
    # layer 1: [TM, 2H] @ [2H, H]  (== concat([hx, hy]) @ W1^T)
    h1 = jnp.tanh(
        jnp.dot(h0.astype(jnp.bfloat16), w1_ref[...],
                preferred_element_type=jnp.float32)
        + b1_ref[...])
    # layer 2: [TM, H] @ [H, horizon*F]
    out_ref[...] = (
        jnp.dot(h1.astype(jnp.bfloat16), w2_ref[...],
                preferred_element_type=jnp.float32)
        + b2_ref[...]).astype(out_ref.dtype)


def refiner_forward(X, Y, packed):
    """X: [B, lookback, N, F], Y: [B, horizon, N, F] -> [B, horizon, N, F]."""
    B, lookback, N, F = X.shape
    _, horizon, _, _ = Y.shape
    M = B * N
    in_cols = (lookback + horizon) * F
    out_cols = horizon * F
    H2 = packed["b_in"].shape[-1]      # 2 * hid_dim
    H = packed["b1"].shape[-1]         # hid_dim

    # Single concat along time + one permute replaces the two separate
    # transpose passes, and its column order matches the block-diagonal weight.
    XY = jnp.concatenate([X, Y], axis=1)                  # [B, L+Hz, N, F]
    XYf = jnp.transpose(XY, (0, 2, 1, 3)).reshape(M, in_cols)
    XYf = XYf.astype(jnp.bfloat16)                        # halve streamed bytes
    # TODO(synk): the remaining wrapper transpose could be folded into 4-D
    # BlockSpecs, but F=4 makes the in-kernel relayout awkward; under jit XLA
    # fuses concat/transpose/cast into a single producer pass.

    # Row tile: big enough to amortize per-step overhead, second-to-last dim
    # multiple of 8; pad rows so the grid divides evenly (padded rows are
    # computed on zeros and sliced off afterwards).
    TM = min(2048, _round_up(M, 8))
    M_pad = _round_up(M, TM)
    if M_pad != M:
        XYf = jnp.pad(XYf, ((0, M_pad - M), (0, 0)))
    grid = (M_pad // TM,)

    flops = 2 * M_pad * (in_cols * H2 + H2 * H + H * out_cols)
    transcendentals = M_pad * (H2 + H)
    bytes_accessed = (M_pad * in_cols * 2 + M_pad * out_cols * 4
                      + (in_cols * H2 + H2 * H + H * out_cols) * 2
                      + (H2 + H + out_cols) * 4)

    out_flat = pl.pallas_call(
        refiner_kernel,
        out_shape=jax.ShapeDtypeStruct((M_pad, out_cols), jnp.float32),
        grid=grid,
        in_specs=[
            # streamed row tiles
            pl.BlockSpec((TM, in_cols), lambda i: (i, 0)),
            # weights / biases: constant index_map -> resident in VMEM
            pl.BlockSpec((in_cols, H2), lambda i: (0, 0)),
            pl.BlockSpec((1, H2), lambda i: (0, 0)),
            pl.BlockSpec((H2, H), lambda i: (0, 0)),
            pl.BlockSpec((1, H), lambda i: (0, 0)),
            pl.BlockSpec((H, out_cols), lambda i: (0, 0)),
            pl.BlockSpec((1, out_cols), lambda i: (0, 0)),
        ],
        out_specs=pl.BlockSpec((TM, out_cols), lambda i: (i, 0)),
        compiler_params=pltpu.CompilerParams(
            dimension_semantics=("parallel",)),   # v7x: shard rows over 2 TCs
        cost_estimate=pl.CostEstimate(
            flops=flops, transcendentals=transcendentals,
            bytes_accessed=bytes_accessed),
    )(XYf, packed["w_in"], packed["b_in"], packed["w1"], packed["b1"],
      packed["w2"], packed["b2"])

    # [M_pad, horizon*F] -> [B, N, horizon, F] -> [B, horizon, N, F]
    out = out_flat[:M].reshape(B, N, horizon, F)
    return jnp.transpose(out, (0, 2, 1, 3))


def init_params(key, lookback, horizon, feature_dim, hid_dim):
    """PyTorch-Linear-style uniform init, weights stored as [in, out]."""
    ks = jax.random.split(key, 8)

    def lin(kw, kb, fan_in, fan_out):
        bound = 1.0 / jnp.sqrt(jnp.float32(fan_in))
        w = jax.random.uniform(kw, (fan_in, fan_out), jnp.float32, -bound, bound)
        b = jax.random.uniform(kb, (1, fan_out), jnp.float32, -bound, bound)
        return w, b

    in_x = lookback * feature_dim
    in_y = horizon * feature_dim
    wxT, bx = lin(ks[0], ks[1], in_x, hid_dim)
    wyT, by = lin(ks[2], ks[3], in_y, hid_dim)
    w1T, b1 = lin(ks[4], ks[5], hid_dim * 2, hid_dim)
    w2T, b2 = lin(ks[6], ks[7], hid_dim, in_y)
    return {"wxT": wxT, "bx": bx, "wyT": wyT, "by": by,
            "w1T": w1T, "b1": b1, "w2T": w2T, "b2": b2}


def pack_params(params, lookback, horizon, feature_dim):
    """Pack weights for the kernel: block-diag input layer + bf16 matmul operands."""
    in_x = lookback * feature_dim
    in_y = horizon * feature_dim
    H = params["bx"].shape[-1]
    w_in = jnp.zeros((in_x + in_y, 2 * H), jnp.float32)
    w_in = w_in.at[:in_x, :H].set(params["wxT"])
    w_in = w_in.at[in_x:, H:].set(params["wyT"])
    b_in = jnp.concatenate([params["bx"], params["by"]], axis=-1)
    return {
        "w_in": w_in.astype(jnp.bfloat16),
        "b_in": b_in,                                  # biases stay f32
        "w1": params["w1T"].astype(jnp.bfloat16),
        "b1": params["b1"],
        "w2": params["w2T"].astype(jnp.bfloat16),
        "b2": params["b2"],
    }


def refiner_reference(X, Y, params):
    """Pure-JAX f32 reference mirroring the PyTorch forward."""
    B, lookback, N, F = X.shape
    _, horizon, _, _ = Y.shape
    Xf = jnp.transpose(X, (0, 2, 1, 3)).reshape(B, N, lookback * F)
    Yf = jnp.transpose(Y, (0, 2, 1, 3)).reshape(B, N, horizon * F)
    hx = jnp.tanh(Xf @ params["wxT"] + params["bx"])
    hy = jnp.tanh(Yf @ params["wyT"] + params["by"])
    h = jnp.tanh(jnp.concatenate([hx, hy], axis=-1) @ params["w1T"] + params["b1"])
    out = h @ params["w2T"] + params["b2"]
    out = out.reshape(B, N, horizon, F)
    return jnp.transpose(out, (0, 2, 1, 3))


if __name__ == "__main__":
    # Small shapes consistent with the module's forward.
    B, lookback, horizon, N, F, H = 2, 8, 4, 8, 4, 32

    key = jax.random.PRNGKey(0)
    kx, ky, kp = jax.random.split(key, 3)

    X = jax.random.normal(kx, (B, lookback, N, F), jnp.float32)
    Y = jax.random.normal(ky, (B, horizon, N, F), jnp.float32)
    params = init_params(kp, lookback, horizon, F, H)
    packed = pack_params(params, lookback, horizon, F)

    fwd = jax.jit(refiner_forward)
    out = jax.block_until_ready(fwd(X, Y, packed))

    ref = refiner_reference(X, Y, params)
    assert out.shape == (B, horizon, N, F), out.shape
    # bf16 matmul operands with f32 accumulation -> loosened tolerance.
    assert jnp.allclose(out, ref, atol=5e-2, rtol=5e-2), "mismatch vs JAX reference"

    print("KERNEL_OK")
</pallas_src>

<mosaic_0001>
module attributes {stable_mosaic.version = 11 : i64} {
  func.func @refiner_kernel(%arg0: i32, %arg1: memref<16x48xbf16, #tpu.memory_space<vmem>>, %arg2: memref<48x64xbf16, #tpu.memory_space<vmem>>, %arg3: memref<1x64xf32, #tpu.memory_space<vmem>>, %arg4: memref<64x32xbf16, #tpu.memory_space<vmem>>, %arg5: memref<1x32xf32, #tpu.memory_space<vmem>>, %arg6: memref<32x16xbf16, #tpu.memory_space<vmem>>, %arg7: memref<1x16xf32, #tpu.memory_space<vmem>>, %arg8: memref<16x16xf32, #tpu.memory_space<vmem>>) attributes {dimension_semantics = [#tpu.dimension_semantics<parallel>], iteration_bounds = array<i64: 1>, scalar_prefetch = 0 : i64, scratch_operands = 0 : i64, tpu.core_type = #tpu.core_type<tc>, window_params = [{transform_indices = @transform_0, window_bounds = array<i64: 16, 48>}, {pipeline_mode = #tpu.pipeline_mode<synchronous>, transform_indices = @transform_1, window_bounds = array<i64: 48, 64>}, {pipeline_mode = #tpu.pipeline_mode<synchronous>, transform_indices = @transform_2, window_bounds = array<i64: 1, 64>}, {pipeline_mode = #tpu.pipeline_mode<synchronous>, transform_indices = @transform_3, window_bounds = array<i64: 64, 32>}, {pipeline_mode = #tpu.pipeline_mode<synchronous>, transform_indices = @transform_4, window_bounds = array<i64: 1, 32>}, {pipeline_mode = #tpu.pipeline_mode<synchronous>, transform_indices = @transform_5, window_bounds = array<i64: 32, 16>}, {pipeline_mode = #tpu.pipeline_mode<synchronous>, transform_indices = @transform_6, window_bounds = array<i64: 1, 16>}, {transform_indices = @transform_7, window_bounds = array<i64: 16, 16>}]} {
    %c0 = arith.constant 0 : index
    %c0_0 = arith.constant 0 : index
    %0 = vector.load %arg1[%c0, %c0_0] : memref<16x48xbf16, #tpu.memory_space<vmem>>, vector<16x48xbf16>
    %c0_1 = arith.constant 0 : index
    %c0_2 = arith.constant 0 : index
    %1 = vector.load %arg2[%c0_1, %c0_2] : memref<48x64xbf16, #tpu.memory_space<vmem>>, vector<48x64xbf16>
    %cst = arith.constant dense<0.000000e+00> : vector<16x64xf32>
    %2 = tpu.matmul %0, %1, %cst {dimension_numbers = #tpu.dot_dimension_numbers<[1], [0], [0], [1], [0, 0, 1, 1], [], []>} : vector<16x48xbf16>, vector<48x64xbf16>, vector<16x64xf32> -> vector<16x64xf32>
    %c0_3 = arith.constant 0 : index
    %c0_4 = arith.constant 0 : index
    %3 = vector.load %arg3[%c0_3, %c0_4] : memref<1x64xf32, #tpu.memory_space<vmem>>, vector<1x64xf32>
    %4 = vector.broadcast %3 : vector<1x64xf32> to vector<16x64xf32>
    %5 = arith.addf %2, %4 : vector<16x64xf32>
    %6 = math.tanh %5 : vector<16x64xf32>
    %7 = arith.truncf %6 : vector<16x64xf32> to vector<16x64xbf16>
    %c0_5 = arith.constant 0 : index
    %c0_6 = arith.constant 0 : index
    %8 = vector.load %arg4[%c0_5, %c0_6] : memref<64x32xbf16, #tpu.memory_space<vmem>>, vector<64x32xbf16>
    %cst_7 = arith.constant dense<0.000000e+00> : vector<16x32xf32>
    %9 = tpu.matmul %7, %8, %cst_7 {dimension_numbers = #tpu.dot_dimension_numbers<[1], [0], [0], [1], [0, 0, 1, 1], [], []>} : vector<16x64xbf16>, vector<64x32xbf16>, vector<16x32xf32> -> vector<16x32xf32>
    %c0_8 = arith.constant 0 : index
    %c0_9 = arith.constant 0 : index
    %10 = vector.load %arg5[%c0_8, %c0_9] : memref<1x32xf32, #tpu.memory_space<vmem>>, vector<1x32xf32>
    %11 = vector.broadcast %10 : vector<1x32xf32> to vector<16x32xf32>
    %12 = arith.addf %9, %11 : vector<16x32xf32>
    %13 = math.tanh %12 : vector<16x32xf32>
    %14 = arith.truncf %13 : vector<16x32xf32> to vector<16x32xbf16>
    %c0_10 = arith.constant 0 : index
    %c0_11 = arith.constant 0 : index
    %15 = vector.load %arg6[%c0_10, %c0_11] : memref<32x16xbf16, #tpu.memory_space<vmem>>, vector<32x16xbf16>
    %cst_12 = arith.constant dense<0.000000e+00> : vector<16x16xf32>
    %16 = tpu.matmul %14, %15, %cst_12 {dimension_numbers = #tpu.dot_dimension_numbers<[1], [0], [0], [1], [0, 0, 1, 1], [], []>} : vector<16x32xbf16>, vector<32x16xbf16>, vector<16x16xf32> -> vector<16x16xf32>
    %c0_13 = arith.constant 0 : index
    %c0_14 = arith.constant 0 : index
    %17 = vector.load %arg7[%c0_13, %c0_14] : memref<1x16xf32, #tpu.memory_space<vmem>>, vector<1x16xf32>
    %18 = vector.broadcast %17 : vector<1x16xf32> to vector<16x16xf32>
    %19 = arith.addf %16, %18 : vector<16x16xf32>
    %c0_15 = arith.constant 0 : index
    %c0_16 = arith.constant 0 : index
    %20 = vector.load %arg8[%c0_15, %c0_16] : memref<16x16xf32, #tpu.memory_space<vmem>>, vector<16x16xf32>
    tpu.vector_store %arg8[%c0_15, %c0_16], %19 {strides = array<i32>} : memref<16x16xf32, #tpu.memory_space<vmem>>, vector<16x16xf32>,
    return
  }
  func.func @transform_0(%arg0: i32) -> (i32, i32) {
    %c0_i32 = arith.constant 0 : i32
    %c0_i32_0 = arith.constant 0 : i32
    return %arg0, %c0_i32 : i32, i32
  }
  func.func @transform_1(%arg0: i32) -> (i32, i32) {
    %c0_i32 = arith.constant 0 : i32
    %c0_i32_0 = arith.constant 0 : i32
    %c0_i32_1 = arith.constant 0 : i32
    return %c0_i32, %c0_i32_0 : i32, i32
  }
  func.func @transform_2(%arg0: i32) -> (i32, i32) {
    %c0_i32 = arith.constant 0 : i32
    %c0_i32_0 = arith.constant 0 : i32
    %c0_i32_1 = arith.constant 0 : i32
    return %c0_i32, %c0_i32_0 : i32, i32
  }
  func.func @transform_3(%arg0: i32) -> (i32, i32) {
    %c0_i32 = arith.constant 0 : i32
    %c0_i32_0 = arith.constant 0 : i32
    %c0_i32_1 = arith.constant 0 : i32
    return %c0_i32, %c0_i32_0 : i32, i32
  }
  func.func @transform_4(%arg0: i32) -> (i32, i32) {
    %c0_i32 = arith.constant 0 : i32
    %c0_i32_0 = arith.constant 0 : i32
    %c0_i32_1 = arith.constant 0 : i32
    return %c0_i32, %c0_i32_0 : i32, i32
  }
  func.func @transform_5(%arg0: i32) -> (i32, i32) {
    %c0_i32 = arith.constant 0 : i32
    %c0_i32_0 = arith.constant 0 : i32
    %c0_i32_1 = arith.constant 0 : i32
    return %c0_i32, %c0_i32_0 : i32, i32
  }
  func.func @transform_6(%arg0: i32) -> (i32, i32) {
    %c0_i32 = arith.constant 0 : i32
    %c0_i32_0 = arith.constant 0 : i32
    %c0_i32_1 = arith.constant 0 : i32
    return %c0_i32, %c0_i32_0 : i32, i32
  }
  func.func @transform_7(%arg0: i32) -> (i32, i32) {
    %c0_i32 = arith.constant 0 : i32
    %c0_i32_0 = arith.constant 0 : i32
    return %arg0, %c0_i32 : i32, i32
  }
}

</mosaic_0001>

<llo_original>
// kernel: refiner_forward.1
$region0: #{refiner_forward.1}
  #allocation0 [shape = 'u32[]', space=smem, size = 0x4, offset = 0x4, fixed_abs, tag = 'smem constant byte address 0x4 - core index']
  #allocation1 [shape = 'u32[144,128]{1,0:T(1,128)}', space=vmem, size = 0x12000, scoped, tag = 'internal scratch']
  %s0 = inlined_call_operand.vmem [shape: bf16[16,48], index: 0, kind: input, shape index: {}]
  %s1 = inlined_call_operand.vmem [shape: bf16[48,64], index: 1, kind: input, shape index: {}]
  %s2 = inlined_call_operand.vmem [shape: f32[1,64], index: 2, kind: input, shape index: {}]
  %s3 = inlined_call_operand.vmem [shape: bf16[64,32], index: 3, kind: input, shape index: {}]
  %s4 = inlined_call_operand.vmem [shape: f32[1,32], index: 4, kind: input, shape index: {}]
  %s5 = inlined_call_operand.vmem [shape: bf16[32,16], index: 5, kind: input, shape index: {}]
  %s6 = inlined_call_operand.vmem [shape: f32[1,16], index: 6, kind: input, shape index: {}]
  %s7 = inlined_call_operand.vmem [shape: f32[16,16], index: 7, kind: output, shape index: {}]
  %s8 = sld [smem:[#allocation0]]
  $region38: #{refiner_forward.1} parent=0
    _
  %s10 = ssub.s32 1, %s8
  %s11 = scalar_select 0, %s10, %s8
  // Predicated region
  $region2: #{refiner_forward.1} parent=0 // pred_check
    _
  $region3: #{refiner_forward.1} parent=0 // pred_check_branch
    %13 = sbr.rel (0) target = $region5
  $region4: #{refiner_forward.1} parent=0 // pred_region
    _
  $region5: #{refiner_forward.1} parent=0 // pred_fallthru
    _
  // Predicated region
  $region6: #{refiner_forward.1} parent=0 // pred_check
    _
  $region7: #{refiner_forward.1} parent=0 // pred_check_branch
    %15 = sbr.rel (0) target = $region9
  $region8: #{refiner_forward.1} parent=0 // pred_region
    _
  $region9: #{refiner_forward.1} parent=0 // pred_fallthru
    _
  // Predicated region
  $region10: #{refiner_forward.1} parent=0 // pred_check
    _
  $region11: #{refiner_forward.1} parent=0 // pred_check_branch
    %17 = sbr.rel (0) target = $region13
  $region12: #{refiner_forward.1} parent=0 // pred_region
    _
  $region13: #{refiner_forward.1} parent=0 // pred_fallthru
    _
  // Predicated region
  $region14: #{refiner_forward.1} parent=0 // pred_check
    _
  $region15: #{refiner_forward.1} parent=0 // pred_check_branch
    %19 = sbr.rel (0) target = $region17
  $region16: #{refiner_forward.1} parent=0 // pred_region
    _
  $region17: #{refiner_forward.1} parent=0 // pred_fallthru
    _
  // Predicated region
  $region18: #{refiner_forward.1} parent=0 // pred_check
    _
  $region19: #{refiner_forward.1} parent=0 // pred_check_branch
    %21 = sbr.rel (0) target = $region21
  $region20: #{refiner_forward.1} parent=0 // pred_region
    _
  $region21: #{refiner_forward.1} parent=0 // pred_fallthru
    _
  // Predicated region
  $region22: #{refiner_forward.1} parent=0 // pred_check
    _
  $region23: #{refiner_forward.1} parent=0 // pred_check_branch
    %23 = sbr.rel (0) target = $region25
  $region24: #{refiner_forward.1} parent=0 // pred_region
    _
  $region25: #{refiner_forward.1} parent=0 // pred_fallthru
    _
  // Predicated region
  $region26: #{refiner_forward.1} parent=0 // pred_check
    _
  $region27: #{refiner_forward.1} parent=0 // pred_check_branch
    %25 = sbr.rel (0) target = $region29
  $region28: #{refiner_forward.1} parent=0 // pred_region
    _
  $region29: #{refiner_forward.1} parent=0 // pred_fallthru
    _
  %v27 = vld [vmem:[%s0] sm:$0xf]
  %v28 = vld [vmem:[%s0 + $0x4] sm:$0xf]
  %v29 = vld [vmem:[%s1] sm:$0xf]
  %v30 = vld [vmem:[%s1 + $0x4] sm:$0xf]
  %v31 = vld [vmem:[%s1 + $0x8] sm:$0xf]
  %v32 = vld [vmem:[%s1 + $0xc] sm:$0xf]
  %v33 = vld [vmem:[%s1 + $0x10] sm:$0xf]
  %v34 = vld [vmem:[%s1 + $0x14] sm:$0xf]
  %v35 = vld [vmem:[%s2] sm:$0x1]
  %v37 = vlaneseq
  %v38 = vshrl.u32 %v37, 7
  %v39 = vsub.s32 0, %v38
  %v40 = vrot.slane %v35, %v39
  %v44 = vunpack.c.l.b16 %v27
  %v45 = vunpack.c.l.b16 %v28
  %v46 = vpack.c.b16 %v45, %v44
  %v53 = vunpack.c.l.b16 %v29
  %v54 = vunpack.c.l.b16 %v30
  %v55 = vunpack.c.l.b16 %v31
  %v56 = vunpack.c.l.b16 %v32
  %v57 = vunpack.c.l.b16 %v33
  %v58 = vunpack.c.l.b16 %v34
  %v59 = vpack.c.b16 %v54, %v53
  %v60 = vpack.c.b16 %v56, %v55
  %v61 = vpack.c.b16 %v58, %v57
  %vm65 = vcmask 392192
  %v67 = vsel %vm65, %v46, 0
  %69 = vmatprep.subr.bf16.mxu0 0
  %70 = vmatpush1.bf16.msra.mxu0 %v59
  %71 = vmatprep.subr.bf16.mxu0 0
  %72 = vmatpush1.bf16.msra.mxu0 %v60
  %73 = vmatprep.subr.bf16.mxu0 0
  %74 = vmatpush1.bf16.msra.mxu0 %v61
  %75 = vmatprep.subr.bf16.mxu0 0
  %76 = vmatpush1.bf16.msra.mxu0 0
  %77 = vmatprep.subr.bf16.mxu0 0
  %78 = vmatpush1.bf16.msra.mxu0 0
  %79 = vmatprep.subr.bf16.mxu0 0
  %80 = vmatpush1.bf16.msra.mxu0 0
  %81 = vmatprep.subr.bf16.mxu0 0
  %82 = vmatpush1.bf16.msra.mxu0 0
  %83 = vmatprep.subr.bf16.mxu0 0
  %84 = vmatpush1.bf16.msra.mxu0 0
  %85 = vmatprep.subr.bf16.mxu0 0
  %86 = vmatpush1.bf16.msra.mxu0 0
  %87 = vmatprep.subr.bf16.mxu0 0
  %88 = vmatpush1.bf16.msra.mxu0 0
  %89 = vmatprep.subr.bf16.mxu0 0
  %90 = vmatpush1.bf16.msra.mxu0 0
  %91 = vmatprep.subr.bf16.mxu0 0
  %92 = vmatpush1.bf16.msra.mxu0 0
  %93 = vmatprep.subr.bf16.mxu0 0
  %94 = vmatpush1.bf16.msra.mxu0 0
  %95 = vmatprep.subr.bf16.mxu0 0
  %96 = vmatpush1.bf16.msra.mxu0 0
  %97 = vmatprep.subr.bf16.mxu0 0
  %98 = vmatpush1.bf16.msra.mxu0 0
  %99 = vmatprep.subr.bf16.mxu0 0
  %100 = vmatpush1.bf16.msra.mxu0 0
  %101 = vmatprep.mubr.bf16.mxu0 0
  %102 = vmatmul.mubr.bf16.gmra.mrb[0].mxu0 %v67
  %v103 = vpop.f32.mrb[0].mxu0
  %v104 = vadd.f32 %v40, %v103
  %v105 = vpop.f32.mrb[0].mxu0
  %v106 = vpop.f32.mrb[0].mxu0
  %v107 = vadd.f32 %v40, %v106
  %v108 = vpop.f32.mrb[0].mxu0
  %109 = vdwg.mxu0
  %v110 = vtanh.pop %v104
  %v111 = vtanh.pop %v107
  %v112 = vpack.c.bf16 %v111, %v110
  %v113 = vld [vmem:[%s3] sm:$0xf]
  %v114 = vld [vmem:[%s3 + $0x4] sm:$0xf]
  %v115 = vld [vmem:[%s3 + $0x8] sm:$0xf]
  %v116 = vld [vmem:[%s3 + $0xc] sm:$0xf]
  %v117 = vld [vmem:[%s3 + $0x10] sm:$0xf]
  %v118 = vld [vmem:[%s3 + $0x14] sm:$0xf]
  %v119 = vld [vmem:[%s3 + $0x18] sm:$0xf]
  %v120 = vld [vmem:[%s3 + $0x1c] sm:$0xf]
  %v121 = vld [vmem:[%s4] sm:$0x1]
  %v123 = vlaneseq
  %v124 = vshrl.u32 %v123, 7
  %v125 = vsub.s32 0, %v124
  %v126 = vrot.slane %v121, %v125
  %v136 = vunpack.c.l.b16 %v113
  %v137 = vunpack.c.l.b16 %v114
  %v138 = vunpack.c.l.b16 %v115
  %v139 = vunpack.c.l.b16 %v116
  %v140 = vunpack.c.l.b16 %v117
  %v141 = vunpack.c.l.b16 %v118
  %v142 = vunpack.c.l.b16 %v119
  %v143 = vunpack.c.l.b16 %v120
  %v144 = vpack.c.b16 %v137, %v136
  %v145 = vpack.c.b16 %v139, %v138
  %v146 = vpack.c.b16 %v141, %v140
  %v147 = vpack.c.b16 %v143, %v142
  %vm152 = vcmask 523264
  %v154 = vsel %vm152, %v112, 0
  %156 = vmatprep.subr.bf16.mxu0 0
  %157 = vmatpush1.bf16.msra.mxu0 %v144
  %158 = vmatprep.subr.bf16.mxu0 0
  %159 = vmatpush1.bf16.msra.mxu0 %v145
  %160 = vmatprep.subr.bf16.mxu0 0
  %161 = vmatpush1.bf16.msra.mxu0 %v146
  %162 = vmatprep.subr.bf16.mxu0 0
  %163 = vmatpush1.bf16.msra.mxu0 %v147
  %164 = vmatprep.subr.bf16.mxu0 0
  %165 = vmatpush1.bf16.msra.mxu0 0
  %166 = vmatprep.subr.bf16.mxu0 0
  %167 = vmatpush1.bf16.msra.mxu0 0
  %168 = vmatprep.subr.bf16.mxu0 0
  %169 = vmatpush1.bf16.msra.mxu0 0
  %170 = vmatprep.subr.bf16.mxu0 0
  %171 = vmatpush1.bf16.msra.mxu0 0
  %172 = vmatprep.subr.bf16.mxu0 0
  %173 = vmatpush1.bf16.msra.mxu0 0
  %174 = vmatprep.subr.bf16.mxu0 0
  %175 = vmatpush1.bf16.msra.mxu0 0
  %176 = vmatprep.subr.bf16.mxu0 0
  %177 = vmatpush1.bf16.msra.mxu0 0
  %178 = vmatprep.subr.bf16.mxu0 0
  %179 = vmatpush1.bf16.msra.mxu0 0
  %180 = vmatprep.subr.bf16.mxu0 0
  %181 = vmatpush1.bf16.msra.mxu0 0
  %182 = vmatprep.subr.bf16.mxu0 0
  %183 = vmatpush1.bf16.msra.mxu0 0
  %184 = vmatprep.subr.bf16.mxu0 0
  %185 = vmatpush1.bf16.msra.mxu0 0
  %186 = vmatprep.subr.bf16.mxu0 0
  %187 = vmatpush1.bf16.msra.mxu0 0
  %188 = vmatprep.mubr.bf16.mxu0 0
  %189 = vmatmul.mubr.bf16.gmra.mrb[0].mxu0 %v154
  %v190 = vpop.f32.mrb[0].mxu0
  %v191 = vadd.f32 %v126, %v190
  %v192 = vpop.f32.mrb[0].mxu0
  %v193 = vpop.f32.mrb[0].mxu0
  %v194 = vadd.f32 %v126, %v193
  %v195 = vpop.f32.mrb[0].mxu0
  %196 = vdwg.mxu0
  %v197 = vtanh.pop %v191
  %v198 = vtanh.pop %v194
  %v199 = vpack.c.bf16 %v198, %v197
  %v200 = vld [vmem:[%s5] sm:$0xf]
  %v201 = vld [vmem:[%s5 + $0x4] sm:$0xf]
  %v202 = vld [vmem:[%s5 + $0x8] sm:$0xf]
  %v203 = vld [vmem:[%s5 + $0xc] sm:$0xf]
  %v204 = vld [vmem:[%s6] sm:$0x1]
  %v206 = vlaneseq
  %v207 = vshrl.u32 %v206, 7
  %v208 = vsub.s32 0, %v207
  %v209 = vrot.slane %v204, %v208
  %v215 = vunpack.c.l.b16 %v200
  %v216 = vunpack.c.l.b16 %v201
  %v217 = vunpack.c.l.b16 %v202
  %v218 = vunpack.c.l.b16 %v203
  %v219 = vpack.c.b16 %v216, %v215
  %v220 = vpack.c.b16 %v218, %v217
  %vm223 = vcmask 261120
  %v225 = vsel %vm223, %v199, 0
  %227 = vmatprep.subr.bf16.mxu0 0
  %228 = vmatpush1.bf16.msra.mxu0 %v219
  %229 = vmatprep.subr.bf16.mxu0 0
  %230 = vmatpush1.bf16.msra.mxu0 %v220
  %231 = vmatprep.subr.bf16.mxu0 0
  %232 = vmatpush1.bf16.msra.mxu0 0
  %233 = vmatprep.subr.bf16.mxu0 0
  %234 = vmatpush1.bf16.msra.mxu0 0
  %235 = vmatprep.subr.bf16.mxu0 0
  %236 = vmatpush1.bf16.msra.mxu0 0
  %237 = vmatprep.subr.bf16.mxu0 0
  %238 = vmatpush1.bf16.msra.mxu0 0
  %239 = vmatprep.subr.bf16.mxu0 0
  %240 = vmatpush1.bf16.msra.mxu0 0
  %241 = vmatprep.subr.bf16.mxu0 0
  %242 = vmatpush1.bf16.msra.mxu0 0
  %243 = vmatprep.subr.bf16.mxu0 0
  %244 = vmatpush1.bf16.msra.mxu0 0
  %245 = vmatprep.subr.bf16.mxu0 0
  %246 = vmatpush1.bf16.msra.mxu0 0
  %247 = vmatprep.subr.bf16.mxu0 0
  %248 = vmatpush1.bf16.msra.mxu0 0
  %249 = vmatprep.subr.bf16.mxu0 0
  %250 = vmatpush1.bf16.msra.mxu0 0
  %251 = vmatprep.subr.bf16.mxu0 0
  %252 = vmatpush1.bf16.msra.mxu0 0
  %253 = vmatprep.subr.bf16.mxu0 0
  %254 = vmatpush1.bf16.msra.mxu0 0
  %255 = vmatprep.subr.bf16.mxu0 0
  %256 = vmatpush1.bf16.msra.mxu0 0
  %257 = vmatprep.subr.bf16.mxu0 0
  %258 = vmatpush1.bf16.msra.mxu0 0
  %259 = vmatprep.mubr.bf16.mxu0 0
  %260 = vmatmul.mubr.bf16.gmra.mrb[0].mxu0 %v225
  %v261 = vpop.f32.mrb[0].mxu0
  %v262 = vadd.f32 %v209, %v261
  %v263 = vpop.f32.mrb[0].mxu0
  %v264 = vpop.f32.mrb[0].mxu0
  %v265 = vadd.f32 %v209, %v264
  %v266 = vpop.f32.mrb[0].mxu0
  %267 = vdwg.mxu0
  %vm268 = vcmask 130048
  %269 = vst.msk [vmem:[%s7] sm:$0xff] %vm268, %v262
  %270 = vst.msk [vmem:[%s7 + $0x8] sm:$0xff] %vm268, %v265
  // Predicated region
  $region30: #{refiner_forward.1} parent=0 // pred_check
    _
  $region31: #{refiner_forward.1} parent=0 // pred_check_branch
    %272 = sbr.rel (0) target = $region33
  $region32: #{refiner_forward.1} parent=0 // pred_region
    _
  $region33: #{refiner_forward.1} parent=0 // pred_fallthru
    _
  // Predicated region
  $region34: #{refiner_forward.1} parent=0 // pred_check
    _
  $region35: #{refiner_forward.1} parent=0 // pred_check_branch
    %274 = sbr.rel (0) target = $region37
  $region36: #{refiner_forward.1} parent=0 // pred_region
    _
  $region37: #{refiner_forward.1} parent=0 // pred_fallthru
    _

</llo_original>
